<compile_context>
chip_gen: v7x
topology: tpu7x:2x2x1
jax: 0.10.0
libtpu: 0.0.40
codegen_flags: <defaults>
</compile_context>

<pallas_src>
import math

import jax
import jax.numpy as jnp
from jax.experimental import pallas as pl
from jax.experimental.pallas import tpu as pltpu


def _round_up(x, m):
    return ((x + m - 1) // m) * m


def _linear_kernel(x_ref, w_ref, b_ref, o_ref):
    # x_ref: (T, K)  w_ref: (K, N)  b_ref: (1, N)  o_ref: (T, N)
    acc = jnp.dot(x_ref[...], w_ref[...], preferred_element_type=jnp.float32)
    o_ref[...] = (acc + b_ref[...]).astype(o_ref.dtype)


def _pick_rows_tile(n_rows, target_rows, min_steps=2):
    """Row-tile: multiple of 8 (or the full extent if n_rows <= 8)."""
    if n_rows <= 8:
        return n_rows
    t = max(8, (min(target_rows, n_rows) // 8) * 8)
    # v7x megacore: prefer >= min_steps grid steps so the 'parallel' grid axis
    # can be sharded across both TensorCores (no-op on v5e / v6e).
    if pl.cdiv(n_rows, t) < min_steps and n_rows >= 8 * min_steps:
        t = max(8, (pl.cdiv(n_rows, min_steps) // 8) * 8)
    return t


def _linear_pallas(x2d, w, b2d, *, target_rows):
    """out2d[i, :] = x2d[i, :] @ w + b2d  via a row-tiled Pallas call."""
    n_rows, k = x2d.shape
    n_cols = w.shape[1]
    t = _pick_rows_tile(n_rows, target_rows)
    grid = (pl.cdiv(n_rows, t),)   # ragged last tile handled by Pallas

    cost = pl.CostEstimate(
        flops=2 * n_rows * k * n_cols,
        transcendentals=0,
        bytes_accessed=4 * (n_rows * (k + n_cols) + k * n_cols + n_cols),
    )

    return pl.pallas_call(
        _linear_kernel,
        out_shape=jax.ShapeDtypeStruct((n_rows, n_cols), x2d.dtype),
        grid=grid,
        in_specs=[
            pl.BlockSpec((t, k), lambda i: (i, 0)),
            # weight / bias: constant block index -> stay resident in VMEM
            pl.BlockSpec((k, n_cols), lambda i: (0, 0)),
            pl.BlockSpec((1, n_cols), lambda i: (0, 0)),
        ],
        out_specs=pl.BlockSpec((t, n_cols), lambda i: (i, 0)),
        compiler_params=pltpu.CompilerParams(dimension_semantics=("parallel",)),
        cost_estimate=cost,
    )(x2d, w, b2d)


def time_feature_embedding(x, weight, bias, *, tm=2048):
    """Equivalent to PyTorch nn.Linear(d_inp, d_model) applied over the last dim.

    x:      (B, S, d_inp)     float32
    weight: (d_model, d_inp)  (PyTorch Linear weight layout)
    bias:   (d_model,)
    returns (B, S, d_model)
    """
    B, S, d_inp = x.shape
    d_model = weight.shape[0]
    M = B * S
    x2d = x.reshape(M, d_inp)

    if d_model >= 128:
        # ---- plain row-major path (output already lane-dense) --------------
        # Cap tile so double-buffered f32 output stays ~<= 12 MiB (v5e default
        # scoped VMEM is 16 MiB; v7x physical VMEM is 64 MiB).
        target_rows = min(tm, max(256, (12 << 20) // (8 * d_model)))
        out2d = _linear_pallas(
            x2d, weight.T, bias.reshape(1, d_model), target_rows=target_rows
        )
    else:
        # ---- row-fold lane-dense path (d_model < 128) -----------------------
        # Fold G consecutive rows into one: (M/G, G*d_inp) @ blockdiag(W.T, G)
        # -> (M/G, G*d_model) with G*d_model a multiple of 128 and >= 512.
        g = math.lcm(d_model, 128) // d_model
        g *= max(1, 512 // (g * d_model))
        M_pad = _round_up(M, g)
        xp = x2d if M_pad == M else jnp.pad(x2d, ((0, M_pad - M), (0, 0)))
        x_fold = xp.reshape(M_pad // g, g * d_inp)              # zero-cost view
        w_fold = jnp.kron(jnp.eye(g, dtype=weight.dtype), weight.T)  # block-diag
        b_fold = jnp.tile(bias, g).reshape(1, g * d_model)
        out_fold = _linear_pallas(
            x_fold, w_fold, b_fold, target_rows=max(8, tm // g)
        )
        out2d = out_fold.reshape(M_pad, d_model)[:M]            # zero-cost view

    return out2d.reshape(B, S, d_model)


if __name__ == "__main__":
    # freq='H' -> d_inp = 5 (per freq_map).
    d_inp = 5
    B, S = 2, 8

    key = jax.random.PRNGKey(0)
    kx, kw, kb, kw2, kb2 = jax.random.split(key, 5)

    # Parameter init mimicking PyTorch nn.Linear default:
    # U(-1/sqrt(d_inp), 1/sqrt(d_inp)) for both weight and bias.
    bound = 1.0 / jnp.sqrt(jnp.float32(d_inp))
    x = jax.random.normal(kx, (B, S, d_inp), jnp.float32)

    # --- small d_model (32): exercises the row-fold lane-dense path ----------
    d_model = 32
    weight = jax.random.uniform(kw, (d_model, d_inp), jnp.float32, -bound, bound)
    bias = jax.random.uniform(kb, (d_model,), jnp.float32, -bound, bound)
    out = jax.block_until_ready(time_feature_embedding(x, weight, bias))
    ref = (
        jnp.einsum("bsk,mk->bsm", x, weight, precision=jax.lax.Precision.HIGHEST)
        + bias
    )
    assert out.shape == (B, S, d_model)
    assert jnp.allclose(out, ref, atol=1e-5, rtol=1e-5)

    # --- d_model >= 128: exercises the plain row-major path ------------------
    d_model2 = 128
    weight2 = jax.random.uniform(kw2, (d_model2, d_inp), jnp.float32, -bound, bound)
    bias2 = jax.random.uniform(kb2, (d_model2,), jnp.float32, -bound, bound)
    out2 = jax.block_until_ready(time_feature_embedding(x, weight2, bias2))
    ref2 = (
        jnp.einsum("bsk,mk->bsm", x, weight2, precision=jax.lax.Precision.HIGHEST)
        + bias2
    )
    assert out2.shape == (B, S, d_model2)
    assert jnp.allclose(out2, ref2, atol=1e-5, rtol=1e-5)

    print("KERNEL_OK")
</pallas_src>

<mosaic_0001>
module attributes {stable_mosaic.version = 11 : i64} {
  func.func @_linear_kernel(%arg0: i32, %arg1: memref<1x80xf32, #tpu.memory_space<vmem>>, %arg2: memref<80x512xf32, #tpu.memory_space<vmem>>, %arg3: memref<1x512xf32, #tpu.memory_space<vmem>>, %arg4: memref<1x512xf32, #tpu.memory_space<vmem>>) attributes {dimension_semantics = [#tpu.dimension_semantics<parallel>], iteration_bounds = array<i64: 1>, scalar_prefetch = 0 : i64, scratch_operands = 0 : i64, tpu.core_type = #tpu.core_type<tc>, window_params = [{transform_indices = @transform_0, window_bounds = array<i64: 1, 80>}, {pipeline_mode = #tpu.pipeline_mode<synchronous>, transform_indices = @transform_1, window_bounds = array<i64: 80, 512>}, {pipeline_mode = #tpu.pipeline_mode<synchronous>, transform_indices = @transform_2, window_bounds = array<i64: 1, 512>}, {transform_indices = @transform_3, window_bounds = array<i64: 1, 512>}]} {
    %c0 = arith.constant 0 : index
    %c0_0 = arith.constant 0 : index
    %0 = vector.load %arg1[%c0, %c0_0] : memref<1x80xf32, #tpu.memory_space<vmem>>, vector<1x80xf32>
    %c0_1 = arith.constant 0 : index
    %c0_2 = arith.constant 0 : index
    %1 = vector.load %arg2[%c0_1, %c0_2] : memref<80x512xf32, #tpu.memory_space<vmem>>, vector<80x512xf32>
    %cst = arith.constant dense<0.000000e+00> : vector<1x512xf32>
    %2 = tpu.matmul %0, %1, %cst {dimension_numbers = #tpu.dot_dimension_numbers<[1], [0], [0], [1], [0, 0, 1, 1], [], []>} : vector<1x80xf32>, vector<80x512xf32>, vector<1x512xf32> -> vector<1x512xf32>
    %c0_3 = arith.constant 0 : index
    %c0_4 = arith.constant 0 : index
    %3 = vector.load %arg3[%c0_3, %c0_4] : memref<1x512xf32, #tpu.memory_space<vmem>>, vector<1x512xf32>
    %4 = arith.addf %2, %3 : vector<1x512xf32>
    %c0_5 = arith.constant 0 : index
    %c0_6 = arith.constant 0 : index
    %5 = vector.load %arg4[%c0_5, %c0_6] : memref<1x512xf32, #tpu.memory_space<vmem>>, vector<1x512xf32>
    tpu.vector_store %arg4[%c0_5, %c0_6], %4 {strides = array<i32>} : memref<1x512xf32, #tpu.memory_space<vmem>>, vector<1x512xf32>,
    return
  }
  func.func @transform_0(%arg0: i32) -> (i32, i32) {
    %c0_i32 = arith.constant 0 : i32
    %c0_i32_0 = arith.constant 0 : i32
    return %arg0, %c0_i32 : i32, i32
  }
  func.func @transform_1(%arg0: i32) -> (i32, i32) {
    %c0_i32 = arith.constant 0 : i32
    %c0_i32_0 = arith.constant 0 : i32
    %c0_i32_1 = arith.constant 0 : i32
    return %c0_i32, %c0_i32_0 : i32, i32
  }
  func.func @transform_2(%arg0: i32) -> (i32, i32) {
    %c0_i32 = arith.constant 0 : i32
    %c0_i32_0 = arith.constant 0 : i32
    %c0_i32_1 = arith.constant 0 : i32
    return %c0_i32, %c0_i32_0 : i32, i32
  }
  func.func @transform_3(%arg0: i32) -> (i32, i32) {
    %c0_i32 = arith.constant 0 : i32
    %c0_i32_0 = arith.constant 0 : i32
    return %arg0, %c0_i32 : i32, i32
  }
}

</mosaic_0001>

<llo_original>
// kernel: tpu_custom_call.1
$region0: #{tpu_custom_call.1}
  #allocation0 [shape = 'u32[]', space=smem, size = 0x4, offset = 0x4, fixed_abs, tag = 'smem constant byte address 0x4 - core index']
  #allocation1 [shape = 'u32[144,128]{1,0:T(1,128)}', space=vmem, size = 0x12000, scoped, tag = 'internal scratch']
  %s0 = inlined_call_operand.hbm [shape: f32[1,80], index: 0, kind: input, shape index: {}]
  %s1 = inlined_call_operand.hbm [shape: f32[80,512], index: 1, kind: input, shape index: {}]
  %s2 = inlined_call_operand.vmem [shape: f32[1,512], index: 2, kind: input, shape index: {}]
  %s3 = inlined_call_operand.hbm [shape: f32[1,512], index: 3, kind: output, shape index: {}]
  %s4 = sld [smem:[#allocation0]]
  $region30: #{tpu_custom_call.1} parent=0
    _
  %s6 = ssub.s32 1, %s4
  %s7 = scalar_select 0, %s6, %s4
  $region1: #{tpu_custom_call.1} parent=0
    #allocation2 [shape = 'u8[512]{0}', space=vmem, size = 0x400, scoped, tag = 'input window, operand 0, single buffered']
    #allocation3 [shape = 's32[1]{0}', space=sflag, size = 0x4, scoped, tag = 'scoped memory for tpu_custom_call.1']
    #allocation4 [shape = 's32[1]{0}', space=sflag, size = 0x4, scoped, tag = 'scoped memory for tpu_custom_call.1']
    #allocation5 [shape = 'u8[163840]{0}', space=vmem, size = 0x28000, scoped, tag = 'input window, operand 1, single buffered']
    #allocation6 [shape = 's32[1]{0}', space=sflag, size = 0x4, scoped, tag = 'scoped memory for tpu_custom_call.1']
    #allocation7 [shape = 'u8[2048]{0}', space=vmem, size = 0x800, scoped, tag = 'output window, operand 0, single buffered']
    %8 = vsyncpa [#allocation3], 0
    %9 = vsyncpa [#allocation6], 0
    %10 = vsyncpa [#allocation4], 0
    // Predicated region
    $region2: #{tpu_custom_call.1} parent=1 // pred_check
      _
    $region3: #{tpu_custom_call.1} parent=1 // pred_check_branch
      %12 = sbr.rel (0) target = $region5
    $region4: #{tpu_custom_call.1} parent=1 // pred_region
      %s14 = ssub.s32 16, 16
      %15 = vsyncadd [#allocation3], %s14
      %s17 = sshll.u32 [#allocation2], 4
      %s18 = int_to_ptr.vmem [resolvable:$true] %s17
      %20 = dma.hbm_to_vmem [thread:$0]  %s0, 16, %s18, [#allocation3]
    $region5: #{tpu_custom_call.1} parent=1 // pred_fallthru
      _
    // Predicated region
    $region6: #{tpu_custom_call.1} parent=1 // pred_check
      _
    $region7: #{tpu_custom_call.1} parent=1 // pred_check_branch
      %22 = sbr.rel (0) target = $region9
    $region8: #{tpu_custom_call.1} parent=1 // pred_region
      %s24 = ssub.s32 5120, 5120
      %25 = vsyncadd [#allocation6], %s24
      %s26 = sshll.u32 [#allocation5], 4
      %s27 = int_to_ptr.vmem [resolvable:$true] %s26
      %32 = dma.hbm_to_vmem [thread:$0]  %s1, 5120, %s27, [#allocation6], 512, 512, 32
    $region9: #{tpu_custom_call.1} parent=1 // pred_fallthru
      _
    // Predicated region
    $region10: #{tpu_custom_call.1} parent=1 // pred_check
      _
    $region11: #{tpu_custom_call.1} parent=1 // pred_check_branch
      %34 = sbr.rel (0) target = $region13
    $region12: #{tpu_custom_call.1} parent=1 // pred_region
      _
    $region13: #{tpu_custom_call.1} parent=1 // pred_fallthru
      _
    // Predicated region
    $region14: #{tpu_custom_call.1} parent=1 // pred_check
      _
    $region15: #{tpu_custom_call.1} parent=1 // pred_check_branch
      %36 = sbr.rel (0) target = $region17
    $region16: #{tpu_custom_call.1} parent=1 // pred_region
      %37 = dma.done [#allocation3], 16
    $region17: #{tpu_custom_call.1} parent=1 // pred_fallthru
      _
    // Predicated region
    $region18: #{tpu_custom_call.1} parent=1 // pred_check
      _
    $region19: #{tpu_custom_call.1} parent=1 // pred_check_branch
      %39 = sbr.rel (0) target = $region21
    $region20: #{tpu_custom_call.1} parent=1 // pred_region
      %40 = dma.done [#allocation6], 5120
    $region21: #{tpu_custom_call.1} parent=1 // pred_fallthru
      _
    %v41 = vld [vmem:[#allocation2] sm:$0x1]
    %v42 = vld [vmem:[#allocation5] sm:$0xff]
    %v43 = vld [vmem:[#allocation5 + $0x8] sm:$0xff]
    %v44 = vld [vmem:[#allocation5 + $0x10] sm:$0xff]
    %v45 = vld [vmem:[#allocation5 + $0x18] sm:$0xff]
    %v46 = vld [vmem:[#allocation5 + $0x20] sm:$0xff]
    %v47 = vld [vmem:[#allocation5 + $0x28] sm:$0xff]
    %v48 = vld [vmem:[#allocation5 + $0x30] sm:$0xff]
    %v49 = vld [vmem:[#allocation5 + $0x38] sm:$0xff]
    %v50 = vld [vmem:[#allocation5 + $0x40] sm:$0xff]
    %v51 = vld [vmem:[#allocation5 + $0x48] sm:$0xff]
    %v52 = vld [vmem:[#allocation5 + $0x50] sm:$0xff]
    %v53 = vld [vmem:[#allocation5 + $0x58] sm:$0xff]
    %v54 = vld [vmem:[#allocation5 + $0x60] sm:$0xff]
    %v55 = vld [vmem:[#allocation5 + $0x68] sm:$0xff]
    %v56 = vld [vmem:[#allocation5 + $0x70] sm:$0xff]
    %v57 = vld [vmem:[#allocation5 + $0x78] sm:$0xff]
    %v58 = vld [vmem:[#allocation5 + $0x80] sm:$0xff]
    %v59 = vld [vmem:[#allocation5 + $0x88] sm:$0xff]
    %v60 = vld [vmem:[#allocation5 + $0x90] sm:$0xff]
    %v61 = vld [vmem:[#allocation5 + $0x98] sm:$0xff]
    %v62 = vld [vmem:[#allocation5 + $0xa0] sm:$0xff]
    %v63 = vld [vmem:[#allocation5 + $0xa8] sm:$0xff]
    %v64 = vld [vmem:[#allocation5 + $0xb0] sm:$0xff]
    %v65 = vld [vmem:[#allocation5 + $0xb8] sm:$0xff]
    %v66 = vld [vmem:[#allocation5 + $0xc0] sm:$0xff]
    %v67 = vld [vmem:[#allocation5 + $0xc8] sm:$0xff]
    %v68 = vld [vmem:[#allocation5 + $0xd0] sm:$0xff]
    %v69 = vld [vmem:[#allocation5 + $0xd8] sm:$0xff]
    %v70 = vld [vmem:[#allocation5 + $0xe0] sm:$0xff]
    %v71 = vld [vmem:[#allocation5 + $0xe8] sm:$0xff]
    %v72 = vld [vmem:[#allocation5 + $0xf0] sm:$0xff]
    %v73 = vld [vmem:[#allocation5 + $0xf8] sm:$0xff]
    %v74 = vld [vmem:[#allocation5 + $0x100] sm:$0xff]
    %v75 = vld [vmem:[#allocation5 + $0x108] sm:$0xff]
    %v76 = vld [vmem:[#allocation5 + $0x110] sm:$0xff]
    %v77 = vld [vmem:[#allocation5 + $0x118] sm:$0xff]
    %v78 = vld [vmem:[#allocation5 + $0x120] sm:$0xff]
    %v79 = vld [vmem:[#allocation5 + $0x128] sm:$0xff]
    %v80 = vld [vmem:[#allocation5 + $0x130] sm:$0xff]
    %v81 = vld [vmem:[#allocation5 + $0x138] sm:$0xff]
    %v82 = vld [vmem:[%s2] sm:$0xf]
    %v84 = vlaneseq
    %v85 = vshrl.u32 %v84, 7
    %v86 = vsub.s32 0, %v85
    %v87 = vrot.slane %v82, %v86
    %v88 = vlaneseq
    %v89 = vshrl.u32 %v88, 7
    %v90 = vsub.s32 1, %v89
    %v91 = vrot.slane %v82, %v90
    %v92 = vlaneseq
    %v93 = vshrl.u32 %v92, 7
    %v94 = vsub.s32 2, %v93
    %v95 = vrot.slane %v82, %v94
    %v96 = vlaneseq
    %v97 = vshrl.u32 %v96, 7
    %v98 = vsub.s32 3, %v97
    %v99 = vrot.slane %v82, %v98
    %vm104 = vcmask 654336
    %v106 = vsel %vm104, %v41, 0
    %108 = vmatprep.subr.mxu0 %v43
    %109 = vmatpush1.msra.mxu0 %v42
    %110 = vmatprep.subr.mxu0 %v47
    %111 = vmatpush1.msra.mxu0 %v46
    %112 = vmatprep.subr.mxu0 %v51
    %113 = vmatpush1.msra.mxu0 %v50
    %114 = vmatprep.subr.mxu0 %v55
    %115 = vmatpush1.msra.mxu0 %v54
    %116 = vmatprep.subr.mxu0 %v59
    %117 = vmatpush1.msra.mxu0 %v58
    %118 = vmatprep.subr.mxu0 %v63
    %119 = vmatpush1.msra.mxu0 %v62
    %120 = vmatprep.subr.mxu0 %v67
    %121 = vmatpush1.msra.mxu0 %v66
    %122 = vmatprep.subr.mxu0 %v71
    %123 = vmatpush1.msra.mxu0 %v70
    %124 = vmatprep.subr.mxu0 %v75
    %125 = vmatpush1.msra.mxu0 %v74
    %126 = vmatprep.subr.mxu0 %v79
    %127 = vmatpush1.msra.mxu0 %v78
    %128 = vmatprep.subr.mxu0 0.0
    %129 = vmatpush1.msra.mxu0 0.0
    %130 = vmatprep.subr.mxu0 0.0
    %131 = vmatpush1.msra.mxu0 0.0
    %132 = vmatprep.subr.mxu0 0.0
    %133 = vmatpush1.msra.mxu0 0.0
    %134 = vmatprep.subr.mxu0 0.0
    %135 = vmatpush1.msra.mxu0 0.0
    %136 = vmatprep.subr.mxu0 0.0
    %137 = vmatpush1.msra.mxu0 0.0
    %138 = vmatprep.subr.mxu0 0.0
    %139 = vmatpush1.msra.mxu0 0.0
    %140 = vmatprep.subr.mxu0 0.0
    %141 = vmatpush1.msra.mxu0 0.0
    %142 = vmatprep.subr.mxu0 0.0
    %143 = vmatpush1.msra.mxu0 0.0
    %144 = vmatprep.subr.mxu0 0.0
    %145 = vmatpush1.msra.mxu0 0.0
    %146 = vmatprep.subr.mxu0 0.0
    %147 = vmatpush1.msra.mxu0 0.0
    %148 = vmatprep.subr.mxu0 0.0
    %149 = vmatpush1.msra.mxu0 0.0
    %150 = vmatprep.subr.mxu0 0.0
    %151 = vmatpush1.msra.mxu0 0.0
    %152 = vmatprep.subr.mxu0 0.0
    %153 = vmatpush1.msra.mxu0 0.0
    %154 = vmatprep.subr.mxu0 0.0
    %155 = vmatpush1.msra.mxu0 0.0
    %156 = vmatprep.subr.mxu0 0.0
    %157 = vmatpush1.msra.mxu0 0.0
    %158 = vmatprep.subr.mxu0 0.0
    %159 = vmatpush1.msra.mxu0 0.0
    %160 = vmatprep.subr.mxu0 0.0
    %161 = vmatpush1.msra.mxu0 0.0
    %162 = vmatprep.subr.mxu0 0.0
    %163 = vmatpush1.msra.mxu0 0.0
    %164 = vmatprep.subr.mxu0 0.0
    %165 = vmatpush1.msra.mxu0 0.0
    %166 = vmatprep.subr.mxu0 0.0
    %167 = vmatpush1.msra.mxu0 0.0
    %168 = vmatprep.subr.mxu0 0.0
    %169 = vmatpush1.msra.mxu0 0.0
    %170 = vmatprep.subr.mxu0 0.0
    %171 = vmatpush1.msra.mxu0 0.0
    %172 = vmatprep.mubr.f32.mxu0 0.0
    %173 = vmatmul.mubr.f32.gmra.mrb[0].mxu0 %v106
    %v174 = vpop.f32.mrb[0].mxu0
    %v175 = vadd.f32 %v87, %v174
    %v176 = vpop.f32.mrb[0].mxu0
    %v177 = vadd.f32 %v91, %v176
    %178 = vdwg.mxu0
    %179 = vmatprep.subr.mxu0 %v45
    %180 = vmatpush1.msra.mxu0 %v44
    %181 = vmatprep.subr.mxu0 %v49
    %182 = vmatpush1.msra.mxu0 %v48
    %183 = vmatprep.subr.mxu0 %v53
    %184 = vmatpush1.msra.mxu0 %v52
    %185 = vmatprep.subr.mxu0 %v57
    %186 = vmatpush1.msra.mxu0 %v56
    %187 = vmatprep.subr.mxu0 %v61
    %188 = vmatpush1.msra.mxu0 %v60
    %189 = vmatprep.subr.mxu0 %v65
    %190 = vmatpush1.msra.mxu0 %v64
    %191 = vmatprep.subr.mxu0 %v69
    %192 = vmatpush1.msra.mxu0 %v68
    %193 = vmatprep.subr.mxu0 %v73
    %194 = vmatpush1.msra.mxu0 %v72
    %195 = vmatprep.subr.mxu0 %v77
    %196 = vmatpush1.msra.mxu0 %v76
    %197 = vmatprep.subr.mxu0 %v81
    %198 = vmatpush1.msra.mxu0 %v80
    %199 = vmatprep.subr.mxu0 0.0
    %200 = vmatpush1.msra.mxu0 0.0
    %201 = vmatprep.subr.mxu0 0.0
    %202 = vmatpush1.msra.mxu0 0.0
    %203 = vmatprep.subr.mxu0 0.0
    %204 = vmatpush1.msra.mxu0 0.0
    %205 = vmatprep.subr.mxu0 0.0
    %206 = vmatpush1.msra.mxu0 0.0
    %207 = vmatprep.subr.mxu0 0.0
    %208 = vmatpush1.msra.mxu0 0.0
    %209 = vmatprep.subr.mxu0 0.0
    %210 = vmatpush1.msra.mxu0 0.0
    %211 = vmatprep.subr.mxu0 0.0
    %212 = vmatpush1.msra.mxu0 0.0
    %213 = vmatprep.subr.mxu0 0.0
    %214 = vmatpush1.msra.mxu0 0.0
    %215 = vmatprep.subr.mxu0 0.0
    %216 = vmatpush1.msra.mxu0 0.0
    %217 = vmatprep.subr.mxu0 0.0
    %218 = vmatpush1.msra.mxu0 0.0
    %219 = vmatprep.subr.mxu0 0.0
    %220 = vmatpush1.msra.mxu0 0.0
    %221 = vmatprep.subr.mxu0 0.0
    %222 = vmatpush1.msra.mxu0 0.0
    %223 = vmatprep.subr.mxu0 0.0
    %224 = vmatpush1.msra.mxu0 0.0
    %225 = vmatprep.subr.mxu0 0.0
    %226 = vmatpush1.msra.mxu0 0.0
    %227 = vmatprep.subr.mxu0 0.0
    %228 = vmatpush1.msra.mxu0 0.0
    %229 = vmatprep.subr.mxu0 0.0
    %230 = vmatpush1.msra.mxu0 0.0
    %231 = vmatprep.subr.mxu0 0.0
    %232 = vmatpush1.msra.mxu0 0.0
    %233 = vmatprep.subr.mxu0 0.0
    %234 = vmatpush1.msra.mxu0 0.0
    %235 = vmatprep.subr.mxu0 0.0
    %236 = vmatpush1.msra.mxu0 0.0
    %237 = vmatprep.subr.mxu0 0.0
    %238 = vmatpush1.msra.mxu0 0.0
    %239 = vmatprep.subr.mxu0 0.0
    %240 = vmatpush1.msra.mxu0 0.0
    %241 = vmatprep.subr.mxu0 0.0
    %242 = vmatpush1.msra.mxu0 0.0
    %243 = vmatprep.mubr.f32.mxu0 0.0
    %244 = vmatmul.mubr.f32.gmra.mrb[0].mxu0 %v106
    %v245 = vpop.f32.mrb[0].mxu0
    %v246 = vadd.f32 %v95, %v245
    %v247 = vpop.f32.mrb[0].mxu0
    %v248 = vadd.f32 %v99, %v247
    %249 = vdwg.mxu0
    %v254 = vcombine.low %v175, %v177
    %v255 = vcombine.low %v246, %v248
    %v257 = vunpack.c.l.s4 1966171168
    %v258 = vunpack.c.0.s8 %v257
    %v259 = vlaneseq
    %v260 = vshrl.u32 %v259, 7
    %v261 = vsub.s32 %v258, %v260
    %v262 = vrot.slane %v254, %v261
    %v264 = vunpack.c.l.s4 1966171168
    %v265 = vunpack.c.0.s8 %v264
    %v266 = vlaneseq
    %v267 = vshrl.u32 %v266, 7
    %v268 = vsub.s32 %v265, %v267
    %v269 = vrot.slane %v255, %v268
    %v270 = vcombine.low %v262, %v269
    %v272 = vunpack.c.l.s4 1966171168
    %v273 = vunpack.c.0.s8 %v272
    %v274 = vlaneseq
    %v275 = vshrl.u32 %v274, 7
    %v276 = vsub.s32 %v273, %v275
    %v277 = vrot.slane %v270, %v276
    %v279 = vlaneseq
    %vm280 = vcmp.ge.s32.totalorder %v279, 0
    %vm281 = vcmp.lt.s32.totalorder %v279, 512
    %vm282 = vmand %vm280, %vm281
    %283 = vst.msk [vmem:[#allocation7] sm:$0xf] %vm282, %v277
    // Predicated region
    $region22: #{tpu_custom_call.1} parent=1 // pred_check
      _
    $region23: #{tpu_custom_call.1} parent=1 // pred_check_branch
      %285 = sbr.rel (0) target = $region25
    $region24: #{tpu_custom_call.1} parent=1 // pred_region
      %s287 = ssub.s32 64, 64
      %288 = vsyncadd [#allocation4], %s287
      %s290 = sshll.u32 [#allocation7], 4
      %s291 = int_to_ptr.vmem [resolvable:$true] %s290
      %293 = dma.vmem_to_hbm [thread:$0]  %s291, 64, %s3, [#allocation4]
    $region25: #{tpu_custom_call.1} parent=1 // pred_fallthru
      _
    // Predicated region
    $region26: #{tpu_custom_call.1} parent=1 // pred_check
      _
    $region27: #{tpu_custom_call.1} parent=1 // pred_check_branch
      %295 = sbr.rel (0) target = $region29
    $region28: #{tpu_custom_call.1} parent=1 // pred_region
      %296 = dma.done [#allocation4], 64
    $region29: #{tpu_custom_call.1} parent=1 // pred_fallthru
      _
    %297 = vsyncpa [#allocation3], 1
    %298 = vsyncpa [#allocation6], 1
    %299 = vsyncpa [#allocation4], 1

</llo_original>
